<compile_context>
chip_gen: v5e
topology: v5e:2x2
jax: 0.10.0
libtpu: 0.0.40
codegen_flags: <defaults>
</compile_context>

<pallas_src>
import functools
import math

import jax
import jax.numpy as jnp
from jax.experimental import pallas as pl
from jax.experimental.pallas import tpu as pltpu


# ----------------------------------------------------------------------------
# Buffer construction (mirrors nn.Module.__init__) — plain JAX, not hot path.
# ----------------------------------------------------------------------------
def make_positional_encoding(max_len: int, d_model: int) -> jnp.ndarray:
    """Returns pe of shape (max_len, 1, d_model), same as the PyTorch buffer."""
    position = jnp.arange(max_len, dtype=jnp.float32)[:, None]               # (L, 1)
    div_term = jnp.exp(
        jnp.arange(0, d_model, 2, dtype=jnp.float32) * (-math.log(10000.0) / d_model)
    )                                                                        # (D/2,)
    angles = position * div_term                                             # (L, D/2)
    pe = jnp.zeros((max_len, d_model), dtype=jnp.float32)
    pe = pe.at[:, 0::2].set(jnp.sin(angles))
    pe = pe.at[:, 1::2].set(jnp.cos(angles))
    return pe[:, None, :]                                                    # (L, 1, D)


# ----------------------------------------------------------------------------
# Kernels (2-D lane-dense view: x/out blocks are (block_s, B*D), pe is (block_s, D))
# ----------------------------------------------------------------------------
def _add_pe_kernel(x_ref, pe_ref, o_ref, *, batch: int):
    pe_full = jnp.tile(pe_ref[...], (1, batch))          # (bs, B*D) lane-replicate
    o_ref[...] = (x_ref[...] + pe_full).astype(o_ref.dtype)


def _add_pe_dropout_kernel(x_ref, pe_ref, bits_ref, o_ref, *,
                           batch: int, threshold: int, scale: float):
    pe_full = jnp.tile(pe_ref[...], (1, batch))          # (bs, B*D)
    y = x_ref[...] + pe_full
    keep = bits_ref[...] >= jnp.uint32(threshold)        # P(keep) = 1 - p
    # Fold the 1/(1-p) scale in; scalar zero avoids a materialized broadcast.
    y = jnp.where(keep, y, jnp.zeros((), y.dtype)) * jnp.asarray(scale, y.dtype)
    o_ref[...] = y.astype(o_ref.dtype)


# ----------------------------------------------------------------------------
# Tile-size selection: ~target_bytes per x tile, rows a multiple of 8 (or = S).
# ----------------------------------------------------------------------------
def _choose_block_s(S: int, row_bytes: int, target_bytes: int) -> int:
    if S * row_bytes <= target_bytes:
        return S
    best = None
    d = 8
    while d < S:
        if S % d == 0 and d * row_bytes <= target_bytes:
            best = d
        d += 8
    if best is not None:
        return best
    d = 8
    while d < S:                      # smallest divisor that keeps (8,·) tiling
        if S % d == 0:
            return d
        d += 8
    return S


# ----------------------------------------------------------------------------
# Forward wrapper
# ----------------------------------------------------------------------------
def positional_encoding_forward(
    x: jnp.ndarray,
    pe: jnp.ndarray,
    *,
    p: float = 0.1,
    train: bool = False,
    rng=None,
    block_s: int | None = None,
    target_block_bytes: int = 4 << 20,     # ~4 MiB per x tile; safe on v5e/v6e/v7x
):
    """x: (S, B, D); pe: (max_len, 1, D).  Returns dropout(x + pe[:S])."""
    S, B, D = x.shape
    p = float(p)
    apply_dropout = bool(train) and p > 0.0
    if apply_dropout and p >= 1.0:
        # torch.nn.Dropout(p=1.0) zeroes everything (avoid inf scale / NaN).
        return jnp.zeros_like(x)

    # Lane-dense 2-D views.
    x2 = x.reshape(S, B * D)
    pe2 = pe[:S, 0, :].astype(x.dtype)                    # (S, D), compute in x.dtype

    row_bytes = B * D * x.dtype.itemsize
    if block_s is None:
        block_s = _choose_block_s(S, row_bytes, target_block_bytes)
    assert S % block_s == 0, "block_s must divide S"
    grid = (S // block_s,)

    args = [x2, pe2]
    in_specs = [
        pl.BlockSpec((block_s, B * D), lambda i: (i, 0)),
        pl.BlockSpec((block_s, D), lambda i: (i, 0)),
    ]

    if apply_dropout:
        if rng is None:
            rng = jax.random.PRNGKey(0)
        # Mask is independent of the tiling (reproducible across block_s choices).
        bits = jax.random.bits(rng, (S, B * D), dtype=jnp.uint32)
        args.append(bits)
        in_specs.append(pl.BlockSpec((block_s, B * D), lambda i: (i, 0)))
        threshold = min(int(round(p * 4294967296.0)), 0xFFFFFFFF)
        kernel = functools.partial(
            _add_pe_dropout_kernel, batch=B, threshold=threshold, scale=1.0 / (1.0 - p)
        )
    else:
        kernel = functools.partial(_add_pe_kernel, batch=B)

    # Explicit VMEM budget: double-buffered x/out/bits tiles + pe tile + headroom.
    x_tile = block_s * B * D * x.dtype.itemsize
    pe_tile = block_s * D * x.dtype.itemsize
    bits_tile = block_s * B * D * 4 if apply_dropout else 0
    vmem_limit = int(min(
        64 << 20,
        max(8 << 20, 2 * (2 * x_tile + pe_tile + bits_tile) + (2 << 20)),
    ))

    out2 = pl.pallas_call(
        kernel,
        out_shape=jax.ShapeDtypeStruct((S, B * D), x.dtype),
        grid_spec=pltpu.PrefetchScalarGridSpec(
            num_scalar_prefetch=0,
            grid=grid,
            in_specs=in_specs,
            out_specs=pl.BlockSpec((block_s, B * D), lambda i: (i, 0)),
        ),
        compiler_params=pltpu.CompilerParams(
            dimension_semantics=("parallel",),   # blocks independent -> 2 TCs on v7x
            vmem_limit_bytes=vmem_limit,
        ),
    )(*args)

    return out2.reshape(S, B, D)


# ----------------------------------------------------------------------------
# Demo / self-check
# ----------------------------------------------------------------------------
if __name__ == "__main__":
    d_model = 32
    max_len = 5000
    S, B = 8, 2
    p = 0.1

    key = jax.random.PRNGKey(0)
    k_x, k_drop = jax.random.split(key)
    x = jax.random.normal(k_x, (S, B, d_model), dtype=jnp.float32)
    pe = make_positional_encoding(max_len, d_model)       # (max_len, 1, d_model)

    # Eval mode (dropout = identity): must match the reference exactly.
    out_eval = jax.block_until_ready(
        positional_encoding_forward(x, pe, p=p, train=False)
    )
    ref = x + pe[:S]
    assert out_eval.shape == (S, B, d_model)
    assert jnp.allclose(out_eval, ref, atol=1e-6, rtol=1e-6), "eval-mode mismatch"

    # Train mode: inverted dropout with p=0.1 applied inside the kernel.
    out_train = jax.block_until_ready(
        positional_encoding_forward(x, pe, p=p, train=True, rng=k_drop)
    )
    assert out_train.shape == (S, B, d_model)
    assert bool(jnp.all(jnp.isfinite(out_train)))
    # Every surviving element must equal (x + pe) / (1 - p); dropped ones are 0.
    scaled = ref / (1.0 - p)
    match = jnp.isclose(out_train, scaled, atol=1e-5, rtol=1e-5) | (out_train == 0.0)
    assert bool(jnp.all(match)), "train-mode dropout semantics violated"
    keep_frac = float(jnp.mean((out_train != 0.0).astype(jnp.float32)))
    assert 0.5 < keep_frac <= 1.0, "implausible dropout keep fraction"

    print("KERNEL_OK")
</pallas_src>

<mosaic_0001>
module attributes {stable_mosaic.version = 11 : i64} {
  func.func @_add_pe_kernel(%arg0: i32, %arg1: memref<8x64xf32, #tpu.memory_space<vmem>>, %arg2: memref<8x32xf32, #tpu.memory_space<vmem>>, %arg3: memref<8x64xf32, #tpu.memory_space<vmem>>) attributes {dimension_semantics = [#tpu.dimension_semantics<parallel>], iteration_bounds = array<i64: 1>, scalar_prefetch = 0 : i64, scratch_operands = 0 : i64, tpu.core_type = #tpu.core_type<tc>, window_params = [{transform_indices = @transform_0, window_bounds = array<i64: 8, 64>}, {transform_indices = @transform_1, window_bounds = array<i64: 8, 32>}, {transform_indices = @transform_2, window_bounds = array<i64: 8, 64>}]} {
    %c0 = arith.constant 0 : index
    %c0_0 = arith.constant 0 : index
    %0 = vector.load %arg2[%c0, %c0_0] : memref<8x32xf32, #tpu.memory_space<vmem>>, vector<8x32xf32>
    %1 = tpu.concatenate %0, %0 in 1 : vector<8x32xf32>, vector<8x32xf32> -> vector<8x64xf32>
    %c0_1 = arith.constant 0 : index
    %c0_2 = arith.constant 0 : index
    %2 = vector.load %arg1[%c0_1, %c0_2] : memref<8x64xf32, #tpu.memory_space<vmem>>, vector<8x64xf32>
    %3 = arith.addf %2, %1 : vector<8x64xf32>
    %c0_3 = arith.constant 0 : index
    %c0_4 = arith.constant 0 : index
    %4 = vector.load %arg3[%c0_3, %c0_4] : memref<8x64xf32, #tpu.memory_space<vmem>>, vector<8x64xf32>
    tpu.vector_store %arg3[%c0_3, %c0_4], %3 {strides = array<i32>} : memref<8x64xf32, #tpu.memory_space<vmem>>, vector<8x64xf32>,
    return
  }
  func.func @transform_0(%arg0: i32) -> (i32, i32) {
    %c0_i32 = arith.constant 0 : i32
    %c0_i32_0 = arith.constant 0 : i32
    return %arg0, %c0_i32 : i32, i32
  }
  func.func @transform_1(%arg0: i32) -> (i32, i32) {
    %c0_i32 = arith.constant 0 : i32
    %c0_i32_0 = arith.constant 0 : i32
    return %arg0, %c0_i32 : i32, i32
  }
  func.func @transform_2(%arg0: i32) -> (i32, i32) {
    %c0_i32 = arith.constant 0 : i32
    %c0_i32_0 = arith.constant 0 : i32
    return %arg0, %c0_i32 : i32, i32
  }
}

</mosaic_0001>

<llo_original>
// kernel: tpu_custom_call.1
$region0: #{tpu_custom_call.1}
  #allocation0 [shape = 'u32[]', space=smem, size = 0x4, offset = 0x4, fixed_abs, tag = 'smem constant byte address 0x4 - core index']
  #allocation1 [shape = 'u32[72,128]{1,0:T(1,128)}', space=vmem, size = 0x9000, scoped, tag = 'internal scratch']
  %s0 = inlined_call_operand.hbm [shape: f32[8,64], index: 0, kind: input, shape index: {}]
  %s1 = inlined_call_operand.hbm [shape: f32[8,32], index: 1, kind: input, shape index: {}]
  %s2 = inlined_call_operand.hbm [shape: f32[8,64], index: 2, kind: output, shape index: {}]
  %s3 = sld [smem:[#allocation0]]
  $region26: #{tpu_custom_call.1} parent=0
    _
  %s5 = ssub.s32 1, %s3
  %s6 = scalar_select 0, %s5, %s3
  $region1: #{tpu_custom_call.1} parent=0
    #allocation2 [shape = 'u8[4096]{0}', space=vmem, size = 0x1000, scoped, tag = 'input window, operand 0, single buffered']
    #allocation3 [shape = 's32[1]{0}', space=sflag, size = 0x4, scoped, tag = 'scoped memory for tpu_custom_call.1']
    #allocation4 [shape = 's32[1]{0}', space=sflag, size = 0x4, scoped, tag = 'scoped memory for tpu_custom_call.1']
    #allocation5 [shape = 'u8[4096]{0}', space=vmem, size = 0x1000, scoped, tag = 'input window, operand 1, single buffered']
    #allocation6 [shape = 's32[1]{0}', space=sflag, size = 0x4, scoped, tag = 'scoped memory for tpu_custom_call.1']
    #allocation7 [shape = 'u8[4096]{0}', space=vmem, size = 0x1000, scoped, tag = 'output window, operand 0, single buffered']
    %7 = vsyncpa [#allocation3], 0
    %8 = vsyncpa [#allocation6], 0
    %9 = vsyncpa [#allocation4], 0
    // Predicated region
    $region2: #{tpu_custom_call.1} parent=1 // pred_check
      _
    $region3: #{tpu_custom_call.1} parent=1 // pred_check_branch
      %11 = sbr.rel (0) target = $region5
    $region4: #{tpu_custom_call.1} parent=1 // pred_region
      %13 = vsyncadd [#allocation3], 0
      %s15 = sshll.u32 %s0, 4
      %s16 = int_to_ptr.hbm [resolvable:$true] %s15
      %s17 = sshll.u32 [#allocation2], 4
      %s18 = int_to_ptr.vmem [resolvable:$true] %s17
      %20 = dma.hbm_to_vmem [thread:$0]  %s16, 128, %s18, [#allocation3]
    $region5: #{tpu_custom_call.1} parent=1 // pred_fallthru
      _
    // Predicated region
    $region6: #{tpu_custom_call.1} parent=1 // pred_check
      _
    $region7: #{tpu_custom_call.1} parent=1 // pred_check_branch
      %22 = sbr.rel (0) target = $region9
    $region8: #{tpu_custom_call.1} parent=1 // pred_region
      %24 = vsyncadd [#allocation6], 0
      %s26 = sshll.u32 %s1, 4
      %s27 = int_to_ptr.hbm [resolvable:$true] %s26
      %s28 = sshll.u32 [#allocation5], 4
      %s29 = int_to_ptr.vmem [resolvable:$true] %s28
      %31 = dma.hbm_to_vmem [thread:$0]  %s27, 128, %s29, [#allocation6]
    $region9: #{tpu_custom_call.1} parent=1 // pred_fallthru
      _
    // Predicated region
    $region10: #{tpu_custom_call.1} parent=1 // pred_check
      _
    $region11: #{tpu_custom_call.1} parent=1 // pred_check_branch
      %33 = sbr.rel (0) target = $region13
    $region12: #{tpu_custom_call.1} parent=1 // pred_region
      %35 = dma.done [#allocation3], 128
    $region13: #{tpu_custom_call.1} parent=1 // pred_fallthru
      _
    // Predicated region
    $region14: #{tpu_custom_call.1} parent=1 // pred_check
      _
    $region15: #{tpu_custom_call.1} parent=1 // pred_check_branch
      %37 = sbr.rel (0) target = $region17
    $region16: #{tpu_custom_call.1} parent=1 // pred_region
      %39 = dma.done [#allocation6], 128
    $region17: #{tpu_custom_call.1} parent=1 // pred_fallthru
      _
    %v40 = vld [vmem:[#allocation5] sm:$0xff]
    %42 = vrot.lane.b32.xlu0 %v40, 32
    %v43 = vpop.permute.xlu0 %42
    %vm45 = vcmask 261120
    %v46 = vsel %vm45, %v40, %v43
    %v47 = vld [vmem:[#allocation2] sm:$0xff]
    %v48 = vadd.f32 %v47, %v46
    %vm49 = vcmask 523264
    %50 = vst.msk [vmem:[#allocation7] sm:$0xff] %vm49, %v48
    // Predicated region
    $region18: #{tpu_custom_call.1} parent=1 // pred_check
      _
    $region19: #{tpu_custom_call.1} parent=1 // pred_check_branch
      %52 = sbr.rel (0) target = $region21
    $region20: #{tpu_custom_call.1} parent=1 // pred_region
      %54 = vsyncadd [#allocation4], 0
      %s56 = sshll.u32 [#allocation7], 4
      %s57 = int_to_ptr.vmem [resolvable:$true] %s56
      %s58 = sshll.u32 %s2, 4
      %s59 = int_to_ptr.hbm [resolvable:$true] %s58
      %61 = dma.vmem_to_hbm [thread:$0]  %s57, 128, %s59, [#allocation4]
    $region21: #{tpu_custom_call.1} parent=1 // pred_fallthru
      _
    // Predicated region
    $region22: #{tpu_custom_call.1} parent=1 // pred_check
      _
    $region23: #{tpu_custom_call.1} parent=1 // pred_check_branch
      %63 = sbr.rel (0) target = $region25
    $region24: #{tpu_custom_call.1} parent=1 // pred_region
      %65 = dma.done [#allocation4], 128
    $region25: #{tpu_custom_call.1} parent=1 // pred_fallthru
      _
    %66 = vsyncpa [#allocation3], 1
    %67 = vsyncpa [#allocation6], 1
    %68 = vsyncpa [#allocation4], 1

</llo_original>
